<compile_context>
chip_gen: v7x
topology: tpu7x:2x2x1
jax: 0.10.0
libtpu: 0.0.40
codegen_flags: <defaults>
</compile_context>

<pallas_src>
import jax
import jax.numpy as jnp
from jax.experimental import pallas as pl
from jax.experimental.pallas import tpu as pltpu


def _attention_kernel(x_ref, htct_ref, w_ref, bv_ref, out_ref):
    """One decoder step of the AttentionLayer forward.

    x_ref:    (S, H)     encoder states ("input"), VMEM-resident across grid
    htct_ref: (1, 1, 2H) this step's ht_ct
    w_ref:    (3H, H)    [W_b^T ; W_e^T] weight slab, VMEM-resident
    bv_ref:   (2, H)     row 0 = W_b.bias + W_e.bias, row 1 = v_b
    out_ref:  (1, S, 1)  softmax(tanh(W_e(ht_ct) + W_b(x)) @ v_b.T, dim=0)
    """
    S, H = x_ref.shape
    bv = bv_ref[...]                                             # (2, H)
    bias = bv[0:1, :]                                            # (1, H)
    v_b = bv[1:2, :]                                             # (1, H)

    # Two small MXU matmuls against static slices of the resident weight slab.
    b = jnp.dot(x_ref[...], w_ref[:H, :],
                preferred_element_type=jnp.float32)              # (S, H)
    a = jnp.dot(htct_ref[0], w_ref[H:, :],
                preferred_element_type=jnp.float32)              # (1, H)
    c = jnp.tanh(a + b + bias)                                   # (S, H)

    # tanh(c) @ v_b.T as a VPU mul + lane reduction (avoids a 1-lane MXU dot).
    j = jnp.sum(c * v_b, axis=-1, keepdims=True)                 # (S, 1)

    # Numerically-stable softmax over dim 0 (sublane axis), like torch.
    m = jnp.max(j, axis=0, keepdims=True)
    e = jnp.exp(j - m)
    denom = jnp.sum(e, axis=0, keepdims=True)
    out_ref[0] = e * pl.reciprocal(denom, approx=False)


def prepare_attention_params(w_b, b_b, w_e, b_e, v_b):
    """One-time parameter packing (keep OUT of the per-step hot path).

    Returns:
      w_slab:  (3H, H) f32 = concat([W_b.weight.T, W_e.weight.T], axis=0)
      bias_vb: (2, H)  f32 = stack([W_b.bias + W_e.bias, v_b[0]])
    """
    w_slab = jnp.concatenate(
        [jnp.transpose(w_b), jnp.transpose(w_e)], axis=0).astype(jnp.float32)
    bias_vb = jnp.stack(
        [(b_b + b_e).astype(jnp.float32), v_b[0].astype(jnp.float32)], axis=0)
    return w_slab, bias_vb


@jax.jit
def attention_forward_steps(x, ht_ct_steps, w_slab, bias_vb):
    """Batched forward over T decoder steps.

    x:           (S, H)      encoder states (shared across all steps)
    ht_ct_steps: (T, 1, 2H)  per-step ht_ct
    w_slab:      (3H, H)     from prepare_attention_params
    bias_vb:     (2, H)      from prepare_attention_params
    Returns (T, S, 1): per-step attention weights (softmax over dim 0).
    """
    S, H = x.shape
    T = ht_ct_steps.shape[0]
    return pl.pallas_call(
        _attention_kernel,
        out_shape=jax.ShapeDtypeStruct((T, S, 1), jnp.float32),
        grid=(T,),
        in_specs=[
            pl.BlockSpec((S, H), lambda t: (0, 0)),              # resident
            pl.BlockSpec((1, 1, 2 * H), lambda t: (t, 0, 0)),    # per step
            pl.BlockSpec((3 * H, H), lambda t: (0, 0)),          # resident
            pl.BlockSpec((2, H), lambda t: (0, 0)),              # resident
        ],
        out_specs=pl.BlockSpec((1, S, 1), lambda t: (t, 0, 0)),
        compiler_params=pltpu.CompilerParams(
            dimension_semantics=("parallel",)),
    )(x, ht_ct_steps, w_slab, bias_vb)


@jax.jit
def attention_forward(x, ht_ct, w_slab, bias_vb):
    """Single-step forward matching AttentionLayer.forward(input, ht_ct)."""
    return attention_forward_steps(x, ht_ct[None], w_slab, bias_vb)[0]


def _attention_reference(x, ht_ct, w_b, b_b, w_e, b_e, v_b):
    """Pure-JAX reference mirroring the PyTorch forward."""
    a = ht_ct @ w_e.T + b_e
    b = x @ w_b.T + b_b
    j = jnp.tanh(a + b) @ v_b.T
    return jax.nn.softmax(j, axis=0)


def init_attention_params(key, hidden):
    """Deterministic init mirroring the module's parameter shapes/inits."""
    kb, ke, kbb, kbe, kv = jax.random.split(key, 5)
    # W_b.weight: xavier_normal_
    std_b = (2.0 / (hidden + hidden)) ** 0.5
    w_b = std_b * jax.random.normal(kb, (hidden, hidden), jnp.float32)
    bound_b = 1.0 / (hidden ** 0.5)
    b_b = jax.random.uniform(kbb, (hidden,), jnp.float32, -bound_b, bound_b)
    # W_e: default nn.Linear init (uniform +-1/sqrt(fan_in)), fan_in = 2*hidden
    bound_e = 1.0 / ((2 * hidden) ** 0.5)
    w_e = jax.random.uniform(ke, (hidden, 2 * hidden), jnp.float32, -bound_e, bound_e)
    b_e = jax.random.uniform(kbe, (hidden,), jnp.float32, -bound_e, bound_e)
    # v_b: xavier_normal_ on a (1, hidden) tensor
    std_v = (2.0 / (1 + hidden)) ** 0.5
    v_b = std_v * jax.random.normal(kv, (1, hidden), jnp.float32)
    return w_b, b_b, w_e, b_e, v_b


if __name__ == "__main__":
    # AttentionLayer(hidden_size=32), seq length 8, 4 decoder steps.
    S, H, T = 8, 32, 4
    key = jax.random.PRNGKey(0)
    key, kx, kh, kp = jax.random.split(key, 4)
    x = jax.random.normal(kx, (S, H), jnp.float32)                 # "input"
    ht_ct_steps = jax.random.normal(kh, (T, 1, 2 * H), jnp.float32)  # per-step "ht_ct"
    w_b, b_b, w_e, b_e, v_b = init_attention_params(kp, H)

    # One-time parameter packing (outside the hot path).
    w_slab, bias_vb = prepare_attention_params(w_b, b_b, w_e, b_e, v_b)

    # Batched-over-steps path (the main optimized entry point).
    out_steps = jax.block_until_ready(
        attention_forward_steps(x, ht_ct_steps, w_slab, bias_vb))
    assert out_steps.shape == (T, S, 1), out_steps.shape
    for t in range(T):
        ref_t = _attention_reference(x, ht_ct_steps[t], w_b, b_b, w_e, b_e, v_b)
        assert jnp.allclose(out_steps[t], ref_t, atol=1e-5, rtol=1e-5), f"step {t} mismatch"

    # Single-step path matching the module's forward signature.
    out_one = jax.block_until_ready(
        attention_forward(x, ht_ct_steps[0], w_slab, bias_vb))
    ref0 = _attention_reference(x, ht_ct_steps[0], w_b, b_b, w_e, b_e, v_b)
    assert out_one.shape == (S, 1), out_one.shape
    assert jnp.allclose(out_one, ref0, atol=1e-5, rtol=1e-5), "single-step mismatch"

    print("KERNEL_OK")
</pallas_src>

<mosaic_0001>
module attributes {stable_mosaic.version = 11 : i64} {
  func.func @_attention_kernel(%arg0: i32, %arg1: memref<8x32xf32, #tpu.memory_space<vmem>>, %arg2: memref<1x1x64xf32, #tpu.memory_space<vmem>>, %arg3: memref<96x32xf32, #tpu.memory_space<vmem>>, %arg4: memref<2x32xf32, #tpu.memory_space<vmem>>, %arg5: memref<1x8x1xf32, #tpu.memory_space<vmem>>) attributes {dimension_semantics = [#tpu.dimension_semantics<parallel>], iteration_bounds = array<i64: 4>, scalar_prefetch = 0 : i64, scratch_operands = 0 : i64, tpu.core_type = #tpu.core_type<tc>, window_params = [{pipeline_mode = #tpu.pipeline_mode<synchronous>, transform_indices = @transform_0, window_bounds = array<i64: 8, 32>}, {transform_indices = @transform_1, window_bounds = array<i64: 1, 1, 64>}, {pipeline_mode = #tpu.pipeline_mode<synchronous>, transform_indices = @transform_2, window_bounds = array<i64: 96, 32>}, {pipeline_mode = #tpu.pipeline_mode<synchronous>, transform_indices = @transform_3, window_bounds = array<i64: 2, 32>}, {transform_indices = @transform_4, window_bounds = array<i64: 1, 8, 1>}]} {
    %c0 = arith.constant 0 : index
    %c0_0 = arith.constant 0 : index
    %0 = vector.load %arg4[%c0, %c0_0] : memref<2x32xf32, #tpu.memory_space<vmem>>, vector<2x32xf32>
    %1 = vector.extract_strided_slice %0 {offsets = [0, 0], sizes = [1, 32], strides = [1, 1]} : vector<2x32xf32> to vector<1x32xf32>
    %2 = vector.extract_strided_slice %0 {offsets = [1, 0], sizes = [1, 32], strides = [1, 1]} : vector<2x32xf32> to vector<1x32xf32>
    %c0_1 = arith.constant 0 : index
    %c0_2 = arith.constant 0 : index
    %3 = vector.load %arg1[%c0_1, %c0_2] : memref<8x32xf32, #tpu.memory_space<vmem>>, vector<8x32xf32>
    %c0_3 = arith.constant 0 : index
    %c0_4 = arith.constant 0 : index
    %4 = vector.load %arg3[%c0_3, %c0_4] : memref<96x32xf32, #tpu.memory_space<vmem>>, vector<32x32xf32>
    %cst = arith.constant dense<0.000000e+00> : vector<8x32xf32>
    %5 = tpu.matmul %3, %4, %cst {dimension_numbers = #tpu.dot_dimension_numbers<[1], [0], [0], [1], [0, 0, 1, 1], [], []>} : vector<8x32xf32>, vector<32x32xf32>, vector<8x32xf32> -> vector<8x32xf32>
    %c0_5 = arith.constant 0 : index
    %c0_6 = arith.constant 0 : index
    %c0_7 = arith.constant 0 : index
    %6 = vector.load %arg2[%c0_5, %c0_6, %c0_7] : memref<1x1x64xf32, #tpu.memory_space<vmem>>, vector<1x1x64xf32>
    %7 = vector.shape_cast %6 : vector<1x1x64xf32> to vector<1x64xf32>
    %c32 = arith.constant 32 : index
    %c0_8 = arith.constant 0 : index
    %8 = vector.load %arg3[%c32, %c0_8] : memref<96x32xf32, #tpu.memory_space<vmem>>, vector<64x32xf32>
    %cst_9 = arith.constant dense<0.000000e+00> : vector<1x32xf32>
    %9 = tpu.matmul %7, %8, %cst_9 {dimension_numbers = #tpu.dot_dimension_numbers<[1], [0], [0], [1], [0, 0, 1, 1], [], []>} : vector<1x64xf32>, vector<64x32xf32>, vector<1x32xf32> -> vector<1x32xf32>
    %10 = vector.broadcast %9 : vector<1x32xf32> to vector<8x32xf32>
    %11 = arith.addf %10, %5 : vector<8x32xf32>
    %12 = vector.broadcast %1 : vector<1x32xf32> to vector<8x32xf32>
    %13 = arith.addf %11, %12 : vector<8x32xf32>
    %14 = math.tanh %13 : vector<8x32xf32>
    %15 = vector.broadcast %2 : vector<1x32xf32> to vector<8x32xf32>
    %16 = arith.mulf %14, %15 : vector<8x32xf32>
    %cst_10 = arith.constant dense<0.000000e+00> : vector<8xf32>
    %17 = vector.multi_reduction <add>, %16, %cst_10 [1] : vector<8x32xf32> to vector<8xf32>
    %18 = vector.shape_cast %17 : vector<8xf32> to vector<8x1xf32>
    %cst_11 = arith.constant dense<0xFF800000> : vector<1xf32>
    %19 = vector.multi_reduction <maximumf>, %18, %cst_11 [0] : vector<8x1xf32> to vector<1xf32>
    %20 = vector.shape_cast %19 : vector<1xf32> to vector<1x1xf32>
    %21 = vector.broadcast %20 : vector<1x1xf32> to vector<8x1xf32>
    %22 = arith.subf %18, %21 : vector<8x1xf32>
    %23 = math.exp %22 : vector<8x1xf32>
    %cst_12 = arith.constant dense<0.000000e+00> : vector<1xf32>
    %24 = vector.multi_reduction <add>, %23, %cst_12 [0] : vector<8x1xf32> to vector<1xf32>
    %25 = vector.shape_cast %24 : vector<1xf32> to vector<1x1xf32>
    %26 = tpu.reciprocal %25 : vector<1x1xf32> -> vector<1x1xf32>
    %27 = vector.broadcast %26 : vector<1x1xf32> to vector<8x1xf32>
    %28 = arith.mulf %23, %27 : vector<8x1xf32>
    %c0_13 = arith.constant 0 : index
    %c0_14 = arith.constant 0 : index
    %c0_15 = arith.constant 0 : index
    %29 = vector.load %arg5[%c0_13, %c0_14, %c0_15] : memref<1x8x1xf32, #tpu.memory_space<vmem>>, vector<1x8x1xf32>
    %30 = vector.shape_cast %29 : vector<1x8x1xf32> to vector<8x1xf32>
    %31 = vector.shape_cast %28 : vector<8x1xf32> to vector<1x8x1xf32>
    tpu.vector_store %arg5[%c0_13, %c0_14, %c0_15], %31 {strides = array<i32>} : memref<1x8x1xf32, #tpu.memory_space<vmem>>, vector<1x8x1xf32>,
    return
  }
  func.func @transform_0(%arg0: i32) -> (i32, i32) {
    %c0_i32 = arith.constant 0 : i32
    %c0_i32_0 = arith.constant 0 : i32
    %c0_i32_1 = arith.constant 0 : i32
    return %c0_i32, %c0_i32_0 : i32, i32
  }
  func.func @transform_1(%arg0: i32) -> (i32, i32, i32) {
    %c0_i32 = arith.constant 0 : i32
    %c0_i32_0 = arith.constant 0 : i32
    %c0_i32_1 = arith.constant 0 : i32
    return %arg0, %c0_i32, %c0_i32_0 : i32, i32, i32
  }
  func.func @transform_2(%arg0: i32) -> (i32, i32) {
    %c0_i32 = arith.constant 0 : i32
    %c0_i32_0 = arith.constant 0 : i32
    %c0_i32_1 = arith.constant 0 : i32
    return %c0_i32, %c0_i32_0 : i32, i32
  }
  func.func @transform_3(%arg0: i32) -> (i32, i32) {
    %c0_i32 = arith.constant 0 : i32
    %c0_i32_0 = arith.constant 0 : i32
    %c0_i32_1 = arith.constant 0 : i32
    return %c0_i32, %c0_i32_0 : i32, i32
  }
  func.func @transform_4(%arg0: i32) -> (i32, i32, i32) {
    %c0_i32 = arith.constant 0 : i32
    %c0_i32_0 = arith.constant 0 : i32
    %c0_i32_1 = arith.constant 0 : i32
    return %arg0, %c0_i32, %c0_i32_0 : i32, i32, i32
  }
}

</mosaic_0001>

<llo_original>
// kernel: attention_forward_steps.1
$region0: #{attention_forward_steps.1}
  #allocation0 [shape = 'u32[]', space=smem, size = 0x4, offset = 0x4, fixed_abs, tag = 'smem constant byte address 0x4 - core index']
  #allocation1 [shape = 'u32[144,128]{1,0:T(1,128)}', space=vmem, size = 0x12000, scoped, tag = 'internal scratch']
  %s0 = inlined_call_operand.vmem [shape: f32[8,32], index: 0, kind: input, shape index: {}]
  %s1 = inlined_call_operand.vmem [shape: f32[4,1,64], index: 1, kind: input, shape index: {}]
  %s2 = inlined_call_operand.vmem [shape: f32[96,32], index: 2, kind: input, shape index: {}]
  %s3 = inlined_call_operand.vmem [shape: f32[2,32], index: 3, kind: input, shape index: {}]
  %s4 = inlined_call_operand.vmem [shape: f32[4,8,1], index: 4, kind: output, shape index: {}]
  %s5 = sld [smem:[#allocation0]]
  $region49: #{attention_forward_steps.1} parent=0
    _
  %s7 = ssub.s32 1, %s5
  %s8 = scalar_select 0, %s7, %s5
  loop: start=0, step=1, limit=6
  $region2: #{attention_forward_steps.1} parent=0 // loop_pre_header
    _
  $region3: #{attention_forward_steps.1} parent=0 // loop_header
    %s10 = sphi 0, %s14
    %p11 = scmp.ge.s32.totalorder %s10, 6
    %s18 = sphi 0, %s18
    %s20 = sphi 0, %s18
    %s21 = sphi 0, %s20
    %s35 = sphi 0, %s21
    %s41 = sphi 0, %s43
    %s44 = sphi 0, %s41
    %s45 = sphi 0, %s44
    %s61 = sphi 0, %s45
    %s65 = sphi 0, %s65
    %s67 = sphi 0, %s65
    %s68 = sphi 0, %s67
    %s82 = sphi 0, %s68
    %s86 = sphi 0, %s86
    %s88 = sphi 0, %s86
    %s89 = sphi 0, %s88
    %s103 = sphi 0, %s89
    %s109 = sphi 0, %s111
    %s112 = sphi 0, %s109
    %s113 = sphi 0, %s112
    %s129 = sphi 0, %s113
  $region4: #{attention_forward_steps.1} parent=0 // loop_header_branch
    %13 = sbr.rel (%p11) target = $region8
  $region5: #{attention_forward_steps.1} parent=0 // loop_body
    %s15 = ssub.s32 %s10, 1
    %s16 = ssub.s32 %s10, 2
    %s17 = sadd.s32 %s10, 1
    %s19 = sadd.s32 %s18, 1
    %p22 = scmp.eq.s32.totalorder %s10, 3
    %p23 = scmp.ne.s32.totalorder %s18, %s20
    %p24 = scmp.eq.s32.totalorder %s10, 0
    %p25 = por %p23, %p24
    %p26 = scmp.ne.s32.totalorder %s18, %s20
    %p27 = scmp.eq.s32.totalorder %s15, 3
    %p28 = por %p26, %p27
    %p29 = scmp.ne.s32.totalorder %s20, %s21
    %p30 = scmp.eq.s32.totalorder %s15, 0
    %p31 = por %p29, %p30
    %p32 = scmp.ne.s32.totalorder %s20, %s21
    %p33 = scmp.eq.s32.totalorder %s16, 3
    %p34 = por %p32, %p33
    %p36 = scmp.ne.s32.totalorder %s21, %s35
    %p37 = scmp.eq.s32.totalorder %s16, 0
    %p38 = por %p36, %p37
    %s39 = ssub.s32 %s10, %s17
    %p40 = scmp.eq.s32.totalorder %s39, 0
    %s42 = sadd.s32 %s41, 1
    %s43 = scalar_select %p40, %s41, %s42
    %p46 = pneg %p40
    %p47 = scmp.eq.s32.totalorder %s10, 3
    %p48 = por %p46, %p47
    %p49 = scmp.ne.s32.totalorder %s41, %s44
    %p50 = scmp.eq.s32.totalorder %s10, 0
    %p51 = por %p49, %p50
    %p52 = scmp.ne.s32.totalorder %s41, %s44
    %p53 = scmp.eq.s32.totalorder %s15, 3
    %p54 = por %p52, %p53
    %p55 = scmp.ne.s32.totalorder %s44, %s45
    %p56 = scmp.eq.s32.totalorder %s15, 0
    %p57 = por %p55, %p56
    %p58 = scmp.ne.s32.totalorder %s44, %s45
    %p59 = scmp.eq.s32.totalorder %s16, 3
    %p60 = por %p58, %p59
    %p62 = scmp.ne.s32.totalorder %s45, %s61
    %p63 = scmp.eq.s32.totalorder %s16, 0
    %p64 = por %p62, %p63
    %s66 = sadd.s32 %s65, 1
    %p69 = scmp.eq.s32.totalorder %s10, 3
    %p70 = scmp.ne.s32.totalorder %s65, %s67
    %p71 = scmp.eq.s32.totalorder %s10, 0
    %p72 = por %p70, %p71
    %p73 = scmp.ne.s32.totalorder %s65, %s67
    %p74 = scmp.eq.s32.totalorder %s15, 3
    %p75 = por %p73, %p74
    %p76 = scmp.ne.s32.totalorder %s67, %s68
    %p77 = scmp.eq.s32.totalorder %s15, 0
    %p78 = por %p76, %p77
    %p79 = scmp.ne.s32.totalorder %s67, %s68
    %p80 = scmp.eq.s32.totalorder %s16, 3
    %p81 = por %p79, %p80
    %p83 = scmp.ne.s32.totalorder %s68, %s82
    %p84 = scmp.eq.s32.totalorder %s16, 0
    %p85 = por %p83, %p84
    %s87 = sadd.s32 %s86, 1
    %p90 = scmp.eq.s32.totalorder %s10, 3
    %p91 = scmp.ne.s32.totalorder %s86, %s88
    %p92 = scmp.eq.s32.totalorder %s10, 0
    %p93 = por %p91, %p92
    %p94 = scmp.ne.s32.totalorder %s86, %s88
    %p95 = scmp.eq.s32.totalorder %s15, 3
    %p96 = por %p94, %p95
    %p97 = scmp.ne.s32.totalorder %s88, %s89
    %p98 = scmp.eq.s32.totalorder %s15, 0
    %p99 = por %p97, %p98
    %p100 = scmp.ne.s32.totalorder %s88, %s89
    %p101 = scmp.eq.s32.totalorder %s16, 3
    %p102 = por %p100, %p101
    %p104 = scmp.ne.s32.totalorder %s89, %s103
    %p105 = scmp.eq.s32.totalorder %s16, 0
    %p106 = por %p104, %p105
    %s107 = ssub.s32 %s10, %s17
    %p108 = scmp.eq.s32.totalorder %s107, 0
    %s110 = sadd.s32 %s109, 1
    %s111 = scalar_select %p108, %s109, %s110
    %p114 = pneg %p108
    %p115 = scmp.eq.s32.totalorder %s10, 3
    %p116 = por %p114, %p115
    %p117 = scmp.ne.s32.totalorder %s109, %s112
    %p118 = scmp.eq.s32.totalorder %s10, 0
    %p119 = por %p117, %p118
    %p120 = scmp.ne.s32.totalorder %s109, %s112
    %p121 = scmp.eq.s32.totalorder %s15, 3
    %p122 = por %p120, %p121
    %p123 = scmp.ne.s32.totalorder %s112, %s113
    %p124 = scmp.eq.s32.totalorder %s15, 0
    %p125 = por %p123, %p124
    %p126 = scmp.ne.s32.totalorder %s112, %s113
    %p127 = scmp.eq.s32.totalorder %s16, 3
    %p128 = por %p126, %p127
    %p130 = scmp.ne.s32.totalorder %s113, %s129
    %p131 = scmp.eq.s32.totalorder %s16, 0
    %p132 = por %p130, %p131
    %p133 = scmp.le.s32.totalorder 1, %s10
    %p134 = scmp.lt.s32.totalorder %s10, 5
    %p135 = pnand %p133, %p134
    %p136 = pneg %p135
    // Predicated region
    $region9: #{attention_forward_steps.1} parent=5 // pred_check
      _
    $region10: #{attention_forward_steps.1} parent=5 // pred_check_branch
      %138 = sbr.rel (%p135) target = $region12
    $region11: #{attention_forward_steps.1} parent=5 // pred_region
      %s139 = ssub.s32 %s10, 1
      // Predicated region
      $region13: #{attention_forward_steps.1} parent=11 // pred_check
        %p140 = pneg %p31
      $region14: #{attention_forward_steps.1} parent=11 // pred_check_branch
        %142 = sbr.rel (%p140) target = $region16
      $region15: #{attention_forward_steps.1} parent=11 // pred_region
        _
      $region16: #{attention_forward_steps.1} parent=11 // pred_fallthru
        _
      // Predicated region
      $region17: #{attention_forward_steps.1} parent=11 // pred_check
        %p143 = pneg %p78
      $region18: #{attention_forward_steps.1} parent=11 // pred_check_branch
        %145 = sbr.rel (%p143) target = $region20
      $region19: #{attention_forward_steps.1} parent=11 // pred_region
        _
      $region20: #{attention_forward_steps.1} parent=11 // pred_fallthru
        _
      // Predicated region
      $region21: #{attention_forward_steps.1} parent=11 // pred_check
        %p146 = pneg %p99
      $region22: #{attention_forward_steps.1} parent=11 // pred_check_branch
        %148 = sbr.rel (%p146) target = $region24
      $region23: #{attention_forward_steps.1} parent=11 // pred_region
        _
      $region24: #{attention_forward_steps.1} parent=11 // pred_fallthru
        _
    $region12: #{attention_forward_steps.1} parent=5 // pred_fallthru
      _
    %p149 = scmp.lt.s32.totalorder %s10, 4
    // Predicated region
    $region25: #{attention_forward_steps.1} parent=5 // pred_check
      %p150 = pneg %p149
    $region26: #{attention_forward_steps.1} parent=5 // pred_check_branch
      %152 = sbr.rel (%p150) target = $region28
    $region27: #{attention_forward_steps.1} parent=5 // pred_region
      // Predicated region
      $region29: #{attention_forward_steps.1} parent=27 // pred_check
        %p153 = pneg %p51
      $region30: #{attention_forward_steps.1} parent=27 // pred_check_branch
        %155 = sbr.rel (%p153) target = $region32
      $region31: #{attention_forward_steps.1} parent=27 // pred_region
        %p156 = scmp.lt.s32.totalorder %s10, 3
        %s157 = scalar_select %p156, %s10, 3
        %s158 = scalar_lea.vmem %s1, %s157
      $region32: #{attention_forward_steps.1} parent=27 // pred_fallthru
        _
    $region28: #{attention_forward_steps.1} parent=5 // pred_fallthru
      _
    %p159 = scmp.le.s32.totalorder 1, %s10
    %p160 = scmp.lt.s32.totalorder %s10, 5
    %p161 = pnand %p159, %p160
    %p162 = pneg %p161
    // Predicated region
    $region33: #{attention_forward_steps.1} parent=5 // pred_check
      _
    $region34: #{attention_forward_steps.1} parent=5 // pred_check_branch
      %164 = sbr.rel (%p161) target = $region36
    $region35: #{attention_forward_steps.1} parent=5 // pred_region
      %s165 = ssub.s32 %s10, 1
      %p166 = pneg %p31
      %p167 = pneg %p28
      %p168 = scmp.lt.s32.totalorder %s15, 3
      %s169 = scalar_select %p168, %s15, 3
      %s170 = scalar_lea.vmem %s1, %s169
      %p171 = pneg %p57
      %p172 = pneg %p54
      %p173 = pneg %p78
      %p174 = pneg %p75
      %p175 = pneg %p99
      %p176 = pneg %p96
      %p177 = pneg %p125
      %p178 = pneg %p122
      %p179 = scmp.lt.s32.totalorder %s15, 3
      %s180 = scalar_select %p179, %s15, 3
      %s181 = smul.addr %s180, 8
      %s182 = scalar_lea.vmem %s4, %s181
      %p183 = scmp.lt.s32.totalorder %s15, 3
      %s184 = scalar_select %p183, %s15, 3
      %s185 = scalar_lea.vmem %s1, %s184
      %p186 = scmp.lt.s32.totalorder %s15, 3
      %s187 = scalar_select %p186, %s15, 3
      %s188 = smul.addr %s187, 8
      %s189 = scalar_lea.vmem %s4, %s188
      %v190 = vld [vmem:[%s3] sm:$0x3]
      %v191 = vld [vmem:[%s0] sm:$0xff]
      %v192 = vld [vmem:[%s2] sm:$0xff]
      %v193 = vld [vmem:[%s2 + $0x8] sm:$0xff]
      %v194 = vld [vmem:[%s2 + $0x10] sm:$0xff]
      %v195 = vld [vmem:[%s2 + $0x18] sm:$0xff]
      %vm196 = vcmask 261120
      %v198 = vsel %vm196, %v191, 0
      %200 = vmatprep.subr.mxu0 0.0
      %201 = vmatpush1.msra.mxu0 %v192
      %202 = vmatprep.subr.mxu0 0.0
      %203 = vmatpush1.msra.mxu0 %v193
      %204 = vmatprep.subr.mxu0 0.0
      %205 = vmatpush1.msra.mxu0 %v194
      %206 = vmatprep.subr.mxu0 0.0
      %207 = vmatpush1.msra.mxu0 %v195
      %208 = vmatprep.subr.mxu0 0.0
      %209 = vmatpush1.msra.mxu0 0.0
      %210 = vmatprep.subr.mxu0 0.0
      %211 = vmatpush1.msra.mxu0 0.0
      %212 = vmatprep.subr.mxu0 0.0
      %213 = vmatpush1.msra.mxu0 0.0
      %214 = vmatprep.subr.mxu0 0.0
      %215 = vmatpush1.msra.mxu0 0.0
      %216 = vmatprep.subr.mxu0 0.0
      %217 = vmatpush1.msra.mxu0 0.0
      %218 = vmatprep.subr.mxu0 0.0
      %219 = vmatpush1.msra.mxu0 0.0
      %220 = vmatprep.subr.mxu0 0.0
      %221 = vmatpush1.msra.mxu0 0.0
      %222 = vmatprep.subr.mxu0 0.0
      %223 = vmatpush1.msra.mxu0 0.0
      %224 = vmatprep.subr.mxu0 0.0
      %225 = vmatpush1.msra.mxu0 0.0
      %226 = vmatprep.subr.mxu0 0.0
      %227 = vmatpush1.msra.mxu0 0.0
      %228 = vmatprep.subr.mxu0 0.0
      %229 = vmatpush1.msra.mxu0 0.0
      %230 = vmatprep.subr.mxu0 0.0
      %231 = vmatpush1.msra.mxu0 0.0
      %232 = vmatprep.subr.mxu0 0.0
      %233 = vmatpush1.msra.mxu0 0.0
      %234 = vmatprep.subr.mxu0 0.0
      %235 = vmatpush1.msra.mxu0 0.0
      %236 = vmatprep.subr.mxu0 0.0
      %237 = vmatpush1.msra.mxu0 0.0
      %238 = vmatprep.subr.mxu0 0.0
      %239 = vmatpush1.msra.mxu0 0.0
      %240 = vmatprep.subr.mxu0 0.0
      %241 = vmatpush1.msra.mxu0 0.0
      %242 = vmatprep.subr.mxu0 0.0
      %243 = vmatpush1.msra.mxu0 0.0
      %244 = vmatprep.subr.mxu0 0.0
      %245 = vmatpush1.msra.mxu0 0.0
      %246 = vmatprep.subr.mxu0 0.0
      %247 = vmatpush1.msra.mxu0 0.0
      %248 = vmatprep.subr.mxu0 0.0
      %249 = vmatpush1.msra.mxu0 0.0
      %250 = vmatprep.subr.mxu0 0.0
      %251 = vmatpush1.msra.mxu0 0.0
      %252 = vmatprep.subr.mxu0 0.0
      %253 = vmatpush1.msra.mxu0 0.0
      %254 = vmatprep.subr.mxu0 0.0
      %255 = vmatpush1.msra.mxu0 0.0
      %256 = vmatprep.subr.mxu0 0.0
      %257 = vmatpush1.msra.mxu0 0.0
      %258 = vmatprep.subr.mxu0 0.0
      %259 = vmatpush1.msra.mxu0 0.0
      %260 = vmatprep.subr.mxu0 0.0
      %261 = vmatpush1.msra.mxu0 0.0
      %262 = vmatprep.subr.mxu0 0.0
      %263 = vmatpush1.msra.mxu0 0.0
      %264 = vmatprep.mubr.f32.mxu0 0.0
      %265 = vmatmul.mubr.f32.gmra.mrb[0].mxu0 %v198
      %v266 = vpop.f32.mrb[0].mxu0
      %v267 = vadd.f32 0.0, %v266
      %v268 = vpop.f32.mrb[0].mxu0
      %269 = vdwg.mxu0
      %v270 = vld [vmem:[%s185] sm:$0x1]
      %v271 = vld [vmem:[%s2 + $0x20] sm:$0xff]
      %v272 = vld [vmem:[%s2 + $0x28] sm:$0xff]
      %v273 = vld [vmem:[%s2 + $0x30] sm:$0xff]
      %v274 = vld [vmem:[%s2 + $0x38] sm:$0xff]
      %v275 = vld [vmem:[%s2 + $0x40] sm:$0xff]
      %v276 = vld [vmem:[%s2 + $0x48] sm:$0xff]
      %v277 = vld [vmem:[%s2 + $0x50] sm:$0xff]
      %v278 = vld [vmem:[%s2 + $0x58] sm:$0xff]
      %vm279 = vcmask 523264
      %v281 = vsel %vm279, %v270, 0
      %283 = vmatprep.subr.mxu0 0.0
      %284 = vmatpush1.msra.mxu0 %v271
      %285 = vmatprep.subr.mxu0 0.0
      %286 = vmatpush1.msra.mxu0 %v272
      %287 = vmatprep.subr.mxu0 0.0
      %288 = vmatpush1.msra.mxu0 %v273
      %289 = vmatprep.subr.mxu0 0.0
      %290 = vmatpush1.msra.mxu0 %v274
      %291 = vmatprep.subr.mxu0 0.0
      %292 = vmatpush1.msra.mxu0 %v275
      %293 = vmatprep.subr.mxu0 0.0
      %294 = vmatpush1.msra.mxu0 %v276
      %295 = vmatprep.subr.mxu0 0.0
      %296 = vmatpush1.msra.mxu0 %v277
      %297 = vmatprep.subr.mxu0 0.0
      %298 = vmatpush1.msra.mxu0 %v278
      %299 = vmatprep.subr.mxu0 0.0
      %300 = vmatpush1.msra.mxu0 0.0
      %301 = vmatprep.subr.mxu0 0.0
      %302 = vmatpush1.msra.mxu0 0.0
      %303 = vmatprep.subr.mxu0 0.0
      %304 = vmatpush1.msra.mxu0 0.0
      %305 = vmatprep.subr.mxu0 0.0
      %306 = vmatpush1.msra.mxu0 0.0
      %307 = vmatprep.subr.mxu0 0.0
      %308 = vmatpush1.msra.mxu0 0.0
      %309 = vmatprep.subr.mxu0 0.0
      %310 = vmatpush1.msra.mxu0 0.0
      %311 = vmatprep.subr.mxu0 0.0
      %312 = vmatpush1.msra.mxu0 0.0
      %313 = vmatprep.subr.mxu0 0.0
      %314 = vmatpush1.msra.mxu0 0.0
      %315 = vmatprep.subr.mxu0 0.0
      %316 = vmatpush1.msra.mxu0 0.0
      %317 = vmatprep.subr.mxu0 0.0
      %318 = vmatpush1.msra.mxu0 0.0
      %319 = vmatprep.subr.mxu0 0.0
      %320 = vmatpush1.msra.mxu0 0.0
      %321 = vmatprep.subr.mxu0 0.0
      %322 = vmatpush1.msra.mxu0 0.0
      %323 = vmatprep.subr.mxu0 0.0
      %324 = vmatpush1.msra.mxu0 0.0
      %325 = vmatprep.subr.mxu0 0.0
      %326 = vmatpush1.msra.mxu0 0.0
      %327 = vmatprep.subr.mxu0 0.0
      %328 = vmatpush1.msra.mxu0 0.0
      %329 = vmatprep.subr.mxu0 0.0
      %330 = vmatpush1.msra.mxu0 0.0
      %331 = vmatprep.subr.mxu0 0.0
      %332 = vmatpush1.msra.mxu0 0.0
      %333 = vmatprep.subr.mxu0 0.0
      %334 = vmatpush1.msra.mxu0 0.0
      %335 = vmatprep.subr.mxu0 0.0
      %336 = vmatpush1.msra.mxu0 0.0
      %337 = vmatprep.subr.mxu0 0.0
      %338 = vmatpush1.msra.mxu0 0.0
      %339 = vmatprep.subr.mxu0 0.0
      %340 = vmatpush1.msra.mxu0 0.0
      %341 = vmatprep.subr.mxu0 0.0
      %342 = vmatpush1.msra.mxu0 0.0
      %343 = vmatprep.subr.mxu0 0.0
      %344 = vmatpush1.msra.mxu0 0.0
      %345 = vmatprep.subr.mxu0 0.0
      %346 = vmatpush1.msra.mxu0 0.0
      %347 = vmatprep.mubr.f32.mxu0 0.0
      %348 = vmatmul.mubr.f32.gmra.mrb[0].mxu0 %v281
      %v349 = vpop.f32.mrb[0].mxu0
      %v350 = vadd.f32 0.0, %v349
      %v351 = vpop.f32.mrb[0].mxu0
      %352 = vdwg.mxu0
      %v353 = vlaneseq
      %v354 = vshrl.u32 %v353, 7
      %v355 = vsub.s32 0, %v354
      %v356 = vrot.slane %v350, %v355
      %v357 = vadd.f32 %v356, %v267
      %v358 = vlaneseq
      %v359 = vshrl.u32 %v358, 7
      %v360 = vsub.s32 0, %v359
      %v361 = vrot.slane %v190, %v360
      %v362 = vadd.f32 %v357, %v361
      %v363 = vtanh.pop %v362
      %v364 = vlaneseq
      %v365 = vshrl.u32 %v364, 7
      %v366 = vsub.s32 1, %v365
      %v367 = vrot.slane %v190, %v366
      %v368 = vmul.f32 %v363, %v367
      %v369 = vsel %vm196, %v368, 0.0
      %370 = vadd.xlane.f32.xlu0 %v369
      %v371 = vpop.xlane.xlu0 %370
      %v372 = vrot.slane %v371, 4
      %v373 = vmax.f32 %v371, %v372
      %v374 = vrot.slane %v373, 2
      %v375 = vmax.f32 %v373, %v374
      %v376 = vrot.slane %v375, 1
      %v377 = vmax.f32 %v375, %v376
      %v378 = vsub.f32 %v371, %v377
      %v379 = vmul.f32 %v378, 1.442695
      %v380 = vpow.pop %v379
      %v381 = vrot.slane %v380, 4
      %v382 = vadd.f32 %v380, %v381
      %v383 = vrot.slane %v382, 2
      %v384 = vadd.f32 %v382, %v383
      %v385 = vrot.slane %v384, 1
      %v386 = vadd.f32 %v384, %v385
      %v387 = vrcp.pop %v386
      %v388 = vmul.f32 %v380, %v387
      %vm389 = vcmask 7168
      %390 = vst.msk [vmem:[%s189] sm:$0xff] %vm389, %v388
      %p391 = scmp.lt.s32.totalorder %s15, 3
      %s392 = scalar_select %p391, %s15, 3
      %s393 = smul.addr %s392, 8
      %s394 = scalar_lea.vmem %s4, %s393
      // Predicated region
      $region37: #{attention_forward_steps.1} parent=35 // pred_check
        %p395 = pneg %p122
      $region38: #{attention_forward_steps.1} parent=35 // pred_check_branch
        %397 = sbr.rel (%p395) target = $region40
      $region39: #{attention_forward_steps.1} parent=35 // pred_region
        _
      $region40: #{attention_forward_steps.1} parent=35 // pred_fallthru
        _
    $region36: #{attention_forward_steps.1} parent=5 // pred_fallthru
      _
    %p398 = scmp.le.s32.totalorder 2, %s10
    // Predicated region
    $region41: #{attention_forward_steps.1} parent=5 // pred_check
      %p399 = pneg %p398
    $region42: #{attention_forward_steps.1} parent=5 // pred_check_branch
      %401 = sbr.rel (%p399) target = $region44
    $region43: #{attention_forward_steps.1} parent=5 // pred_region
      %s402 = ssub.s32 %s10, 2
      // Predicated region
      $region45: #{attention_forward_steps.1} parent=43 // pred_check
        %p403 = pneg %p128
      $region46: #{attention_forward_steps.1} parent=43 // pred_check_branch
        %405 = sbr.rel (%p403) target = $region48
      $region47: #{attention_forward_steps.1} parent=43 // pred_region
        %p406 = scmp.lt.s32.totalorder %s16, 3
        %s407 = scalar_select %p406, %s16, 3
        %s408 = smul.addr %s407, 8
        %s409 = scalar_lea.vmem %s4, %s408
      $region48: #{attention_forward_steps.1} parent=43 // pred_fallthru
        _
    $region44: #{attention_forward_steps.1} parent=5 // pred_fallthru
      _
  $region6: #{attention_forward_steps.1} parent=0 // loop_footer
    %s14 = sadd.s32 1, %s10
  $region7: #{attention_forward_steps.1} parent=0 // loop_footer_branch
    %9 = sbr.rel target = $region3
  $region8: #{attention_forward_steps.1} parent=0 // loop_exit
    _

</llo_original>
